<compile_context>
chip_gen: v7x
topology: tpu7x:2x2x1
jax: 0.10.0
libtpu: 0.0.40
codegen_flags: <defaults>
</compile_context>

<pallas_src>
import jax
import jax.numpy as jnp
import numpy as np
from jax import lax
from jax.experimental import pallas as pl
from jax.experimental.pallas import tpu as pltpu


def _bow_kernel(feat_ref, sel_ref, cent_ref, csq_ref, out_ref):
    # feat_ref: (R, D)     f32   R = B*nc flattened feature rows of this group
    # sel_ref : (B, R)     f32   block-diag selector: valid[b, j-b*nc] inside
    #                            batch b's column block, 0 elsewhere
    # cent_ref: (Kpad, D)  f32   rows >= K are zeros
    # csq_ref : (1, Kpad)  f32   ||c||^2, +1e30 sentinel on padded lanes
    # out_ref : (B, Kpad)  f32   masked per-batch histogram
    x = feat_ref[...]                                   # (R, D)
    c = cent_ref[...]                                   # (Kpad, D)

    # Squared-distance proxy: single MXU matmul, f32 accumulation.
    dots = lax.dot_general(
        x, c,
        dimension_numbers=(((1,), (1,)), ((), ())),
        preferred_element_type=jnp.float32)             # (R, Kpad)
    dist = csq_ref[...] - 2.0 * dots                    # pad lanes ~1e30

    # First-index argmin -> one-hot assignment (lane-dense, XLU reductions).
    R, Kpad = dist.shape
    col = lax.broadcasted_iota(jnp.int32, (R, Kpad), 1)
    min_d = jnp.min(dist, axis=-1, keepdims=True)       # (R, 1)
    assign = jnp.min(jnp.where(dist == min_d, col, Kpad),
                     axis=-1, keepdims=True)            # (R, 1), tie -> lowest
    onehot = (assign == col).astype(jnp.float32)        # (R, Kpad)

    # Masked per-batch histogram as ONE 2-D MXU matmul with the precomputed
    # block-diagonal selector (mask already folded in by the wrapper).
    out_ref[...] = jnp.dot(sel_ref[...], onehot,
                           preferred_element_type=jnp.float32)   # (B, Kpad)


def _choose_block_batch(nb, nc, D, Kpad, vmem_budget=8 * 1024 * 1024):
    """Batches per grid step: sublane-aligned, >=2 grid steps when possible,
    double-buffered working set well inside every generation's VMEM budget."""
    if nb < 16:
        return nb                      # single step; block == full batch dim
    B = 8
    while True:
        nxt = B * 2
        if nxt > 64 or nb // nxt < 2:  # keep >=2 parallel steps (megacore)
            break
        step_bytes = (2 * (nxt * nc * D * 4 + nxt * nxt * nc * 4)
                      + 2 * nxt * Kpad * 4)
        if step_bytes > vmem_budget:
            break
        B = nxt
    return B


def bow_forward(features, mask, centroids, *, block_batch=None):
    """Pallas implementation of BagOfWordsExtractor.forward.

    features: (nb, nc, D) float32
    mask:     (nb, nc)    bool   (True -> position ignored)
    centroids:(K, D)      float32 (the fitted k-means codebook)
    returns:  (nb, K)     float32 histogram of nearest-centroid assignments
    """
    features = features.astype(jnp.float32)
    nb, nc, D = features.shape
    K = centroids.shape[0]
    centroids = centroids.astype(jnp.float32)

    # Lane-pad the codebook to a 128-multiple; padded rows can never win.
    Kpad = ((K + 127) // 128) * 128
    cent_pad = jnp.zeros((Kpad, D), jnp.float32).at[:K].set(centroids)
    csq = jnp.full((1, Kpad), 1e30, jnp.float32)
    csq = csq.at[0, :K].set(jnp.sum(centroids * centroids, axis=-1))

    B = block_batch if block_batch is not None else _choose_block_batch(nb, nc, D, Kpad)
    nb_pad = ((nb + B - 1) // B) * B

    # Block-diagonal selector with the mask folded in, built once in the
    # wrapper (pure layout plumbing):  sel[b, j] = valid[b, j - (b%B)*nc] if
    # j is inside batch b's column block, else 0.
    valid = jnp.logical_not(mask).astype(jnp.float32)                 # (nb, nc)
    valid_rep = jnp.tile(valid, (1, B))                               # (nb, B*nc)
    bmod = (jnp.arange(nb) % B)[:, None]                              # (nb, 1)
    colj = jnp.arange(B * nc)[None, :]                                # (1, B*nc)
    on_diag = jnp.logical_and(colj >= bmod * nc, colj < (bmod + 1) * nc)
    sel = jnp.where(on_diag, valid_rep, 0.0)                          # (nb, B*nc)

    feats = features
    if nb_pad != nb:
        feats = jnp.concatenate(
            [feats, jnp.zeros((nb_pad - nb, nc, D), jnp.float32)], axis=0)
        sel = jnp.concatenate(
            [sel, jnp.zeros((nb_pad - nb, B * nc), jnp.float32)], axis=0)

    # Wrapper-side flatten so the kernel needs no in-kernel reshape/relayout.
    feats_flat = feats.reshape(nb_pad * nc, D)

    # TODO(synk): for very large nc*D, add an inner "arbitrary" grid axis over
    # nc tiles with a (B, Kpad) VMEM accumulator instead of loading the whole
    # (B*nc, D) slab per batch group.
    out = pl.pallas_call(
        _bow_kernel,
        out_shape=jax.ShapeDtypeStruct((nb_pad, Kpad), jnp.float32),
        grid_spec=pltpu.PrefetchScalarGridSpec(
            num_scalar_prefetch=0,
            grid=(nb_pad // B,),
            in_specs=[
                pl.BlockSpec((B * nc, D), lambda i: (i, 0)),     # flat features
                pl.BlockSpec((B, B * nc), lambda i: (i, 0)),     # selector
                pl.BlockSpec((Kpad, D), lambda i: (0, 0)),       # padded centroids
                pl.BlockSpec((1, Kpad), lambda i: (0, 0)),       # ||c||^2 + sentinels
            ],
            out_specs=pl.BlockSpec((B, Kpad), lambda i: (i, 0)),
        ),
        compiler_params=pltpu.CompilerParams(
            dimension_semantics=("parallel",)),
    )(feats_flat, sel, cent_pad, csq)

    return out[:nb, :K]


def kmeans_fit(features2d, num_bags, n_iters, key):
    """Deterministic Lloyd's k-means fit (plain-JAX glue, mimics Kmeans.fit)."""
    N, D = features2d.shape
    idx = jax.random.choice(key, N, (num_bags,), replace=False)
    cents = features2d[idx]
    for _ in range(n_iters):
        d = jnp.sum((features2d[:, None, :] - cents[None, :, :]) ** 2, axis=-1)
        assign = jnp.argmin(d, axis=-1)
        onehot = jax.nn.one_hot(assign, num_bags, dtype=jnp.float32)  # (N, K)
        counts = onehot.sum(axis=0)                                   # (K,)
        sums = onehot.T @ features2d                                  # (K, D)
        new = sums / jnp.maximum(counts, 1.0)[:, None]
        cents = jnp.where(counts[:, None] > 0, new, cents)
    return cents


def ref_forward(features, mask, centroids, num_bags):
    """Plain-JAX reference matching the PyTorch forward semantics."""
    nb, nc, D = features.shape
    f = features.reshape(-1, D)
    dots = f @ centroids.T
    dist = (jnp.sum(f * f, axis=-1, keepdims=True)
            + jnp.sum(centroids * centroids, axis=-1)[None, :]
            - 2.0 * dots)
    assign = jnp.argmin(dist, axis=-1).reshape(nb, nc) + 1
    assign = jnp.where(mask, 0, assign)
    hist = jax.nn.one_hot(assign, num_bags + 1).sum(axis=1)[:, 1:]
    return hist.astype(jnp.float32)


if __name__ == "__main__":
    key = jax.random.PRNGKey(0)
    k_feat, k_mask, k_fit, k_feat2, k_mask2 = jax.random.split(key, 5)

    num_bags = 8
    n_iters_kmeans = 10

    # --- small config (module-consistent shapes) ---
    nb, nc, D = 2, 16, 32
    features = jax.random.normal(k_feat, (nb, nc, D), dtype=jnp.float32)
    mask = jax.random.bernoulli(k_mask, 0.25, (nb, nc))

    centroids = kmeans_fit(features.reshape(-1, D), num_bags,
                           n_iters_kmeans, k_fit)

    hist = jax.block_until_ready(bow_forward(features, mask, centroids))
    expected = ref_forward(features, mask, centroids, num_bags)
    if not np.allclose(np.asarray(hist), np.asarray(expected), atol=1e-5):
        raise AssertionError("Pallas kernel mismatch vs reference (small config)")

    # --- batched config: exercises B=8 per step, 2 parallel grid steps ---
    nb2, nc2, D2 = 16, 16, 32
    features2 = jax.random.normal(k_feat2, (nb2, nc2, D2), dtype=jnp.float32)
    mask2 = jax.random.bernoulli(k_mask2, 0.25, (nb2, nc2))
    centroids2 = kmeans_fit(features2.reshape(-1, D2), num_bags,
                            n_iters_kmeans, k_fit)

    hist2 = jax.block_until_ready(bow_forward(features2, mask2, centroids2))
    expected2 = ref_forward(features2, mask2, centroids2, num_bags)
    if not np.allclose(np.asarray(hist2), np.asarray(expected2), atol=1e-5):
        raise AssertionError("Pallas kernel mismatch vs reference (batched config)")

    print("KERNEL_OK")
</pallas_src>

<mosaic_0001>
module attributes {stable_mosaic.version = 11 : i64} {
  func.func @_bow_kernel(%arg0: i32, %arg1: memref<32x32xf32, #tpu.memory_space<vmem>>, %arg2: memref<2x32xf32, #tpu.memory_space<vmem>>, %arg3: memref<128x32xf32, #tpu.memory_space<vmem>>, %arg4: memref<1x128xf32, #tpu.memory_space<vmem>>, %arg5: memref<2x128xf32, #tpu.memory_space<vmem>>) attributes {dimension_semantics = [#tpu.dimension_semantics<parallel>], iteration_bounds = array<i64: 1>, scalar_prefetch = 0 : i64, scratch_operands = 0 : i64, tpu.core_type = #tpu.core_type<tc>, window_params = [{transform_indices = @transform_0, window_bounds = array<i64: 32, 32>}, {transform_indices = @transform_1, window_bounds = array<i64: 2, 32>}, {pipeline_mode = #tpu.pipeline_mode<synchronous>, transform_indices = @transform_2, window_bounds = array<i64: 128, 32>}, {pipeline_mode = #tpu.pipeline_mode<synchronous>, transform_indices = @transform_3, window_bounds = array<i64: 1, 128>}, {transform_indices = @transform_4, window_bounds = array<i64: 2, 128>}]} {
    %c0 = arith.constant 0 : index
    %c0_0 = arith.constant 0 : index
    %0 = vector.load %arg1[%c0, %c0_0] : memref<32x32xf32, #tpu.memory_space<vmem>>, vector<32x32xf32>
    %c0_1 = arith.constant 0 : index
    %c0_2 = arith.constant 0 : index
    %1 = vector.load %arg3[%c0_1, %c0_2] : memref<128x32xf32, #tpu.memory_space<vmem>>, vector<128x32xf32>
    %cst = arith.constant dense<0.000000e+00> : vector<32x128xf32>
    %2 = tpu.matmul %0, %1, %cst {dimension_numbers = #tpu.dot_dimension_numbers<[1], [1], [0], [0], [0, 0, 1, 0], [], []>} : vector<32x32xf32>, vector<128x32xf32>, vector<32x128xf32> -> vector<32x128xf32>
    %c0_3 = arith.constant 0 : index
    %c0_4 = arith.constant 0 : index
    %3 = vector.load %arg4[%c0_3, %c0_4] : memref<1x128xf32, #tpu.memory_space<vmem>>, vector<1x128xf32>
    %cst_5 = arith.constant 2.000000e+00 : f32
    %4 = vector.broadcast %cst_5 : f32 to vector<32x128xf32>
    %5 = arith.mulf %4, %2 : vector<32x128xf32>
    %6 = vector.broadcast %3 : vector<1x128xf32> to vector<32x128xf32>
    %7 = arith.subf %6, %5 : vector<32x128xf32>
    %8 = tpu.iota {dimensions = array<i32: 1>} : vector<32x128xi32>
    %cst_6 = arith.constant dense<0x7F800000> : vector<32xf32>
    %9 = vector.multi_reduction <minimumf>, %7, %cst_6 [1] : vector<32x128xf32> to vector<32xf32>
    %10 = vector.shape_cast %9 : vector<32xf32> to vector<32x1xf32>
    %11 = vector.broadcast %10 : vector<32x1xf32> to vector<32x128xf32>
    %12 = arith.cmpf oeq, %7, %11 : vector<32x128xf32>
    %c128_i32 = arith.constant 128 : i32
    %13 = vector.broadcast %c128_i32 : i32 to vector<32x128xi32>
    %14 = arith.select %12, %8, %13 : vector<32x128xi1>, vector<32x128xi32>
    %cst_7 = arith.constant dense<2147483647> : vector<32xi32>
    %15 = vector.multi_reduction <minsi>, %14, %cst_7 [1] : vector<32x128xi32> to vector<32xi32>
    %16 = vector.shape_cast %15 : vector<32xi32> to vector<32x1xi32>
    %17 = vector.broadcast %16 : vector<32x1xi32> to vector<32x128xi32>
    %18 = arith.cmpi eq, %17, %8 : vector<32x128xi32>
    %19 = arith.extui %18 : vector<32x128xi1> to vector<32x128xi32>
    %20 = arith.sitofp %19 : vector<32x128xi32> to vector<32x128xf32>
    %c0_8 = arith.constant 0 : index
    %c0_9 = arith.constant 0 : index
    %21 = vector.load %arg2[%c0_8, %c0_9] : memref<2x32xf32, #tpu.memory_space<vmem>>, vector<2x32xf32>
    %cst_10 = arith.constant dense<0.000000e+00> : vector<2x128xf32>
    %22 = tpu.matmul %21, %20, %cst_10 {dimension_numbers = #tpu.dot_dimension_numbers<[1], [0], [0], [1], [0, 0, 1, 1], [], []>} : vector<2x32xf32>, vector<32x128xf32>, vector<2x128xf32> -> vector<2x128xf32>
    %c0_11 = arith.constant 0 : index
    %c0_12 = arith.constant 0 : index
    %23 = vector.load %arg5[%c0_11, %c0_12] : memref<2x128xf32, #tpu.memory_space<vmem>>, vector<2x128xf32>
    tpu.vector_store %arg5[%c0_11, %c0_12], %22 {strides = array<i32>} : memref<2x128xf32, #tpu.memory_space<vmem>>, vector<2x128xf32>,
    return
  }
  func.func @transform_0(%arg0: i32) -> (i32, i32) {
    %c0_i32 = arith.constant 0 : i32
    %c0_i32_0 = arith.constant 0 : i32
    return %arg0, %c0_i32 : i32, i32
  }
  func.func @transform_1(%arg0: i32) -> (i32, i32) {
    %c0_i32 = arith.constant 0 : i32
    %c0_i32_0 = arith.constant 0 : i32
    return %arg0, %c0_i32 : i32, i32
  }
  func.func @transform_2(%arg0: i32) -> (i32, i32) {
    %c0_i32 = arith.constant 0 : i32
    %c0_i32_0 = arith.constant 0 : i32
    %c0_i32_1 = arith.constant 0 : i32
    return %c0_i32, %c0_i32_0 : i32, i32
  }
  func.func @transform_3(%arg0: i32) -> (i32, i32) {
    %c0_i32 = arith.constant 0 : i32
    %c0_i32_0 = arith.constant 0 : i32
    %c0_i32_1 = arith.constant 0 : i32
    return %c0_i32, %c0_i32_0 : i32, i32
  }
  func.func @transform_4(%arg0: i32) -> (i32, i32) {
    %c0_i32 = arith.constant 0 : i32
    %c0_i32_0 = arith.constant 0 : i32
    return %arg0, %c0_i32 : i32, i32
  }
}

</mosaic_0001>

<llo_original>
// kernel: tpu_custom_call.1
$region0: #{tpu_custom_call.1}
  #allocation0 [shape = 'u32[]', space=smem, size = 0x4, offset = 0x4, fixed_abs, tag = 'smem constant byte address 0x4 - core index']
  #allocation1 [shape = 'u32[144,128]{1,0:T(1,128)}', space=vmem, size = 0x12000, scoped, tag = 'internal scratch']
  %s0 = inlined_call_operand.vmem [shape: f32[32,32], index: 0, kind: input, shape index: {}]
  %s1 = inlined_call_operand.vmem [shape: f32[2,32], index: 1, kind: input, shape index: {}]
  %s2 = inlined_call_operand.vmem [shape: f32[128,32], index: 2, kind: input, shape index: {}]
  %s3 = inlined_call_operand.vmem [shape: f32[1,128], index: 3, kind: input, shape index: {}]
  %s4 = inlined_call_operand.hbm [shape: f32[2,128], index: 4, kind: output, shape index: {}]
  %s5 = sld [smem:[#allocation0]]
  $region26: #{tpu_custom_call.1} parent=0
    _
  %s7 = ssub.s32 1, %s5
  %s8 = scalar_select 0, %s7, %s5
  $region1: #{tpu_custom_call.1} parent=0
    #allocation2 [shape = 'u8[1024]{0}', space=vmem, size = 0x400, scoped, tag = 'output window, operand 0, single buffered']
    #allocation3 [shape = 's32[1]{0}', space=sflag, size = 0x4, scoped, tag = 'scoped memory for tpu_custom_call.1']
    %9 = vsyncpa [#allocation3], 0
    // Predicated region
    $region2: #{tpu_custom_call.1} parent=1 // pred_check
      _
    $region3: #{tpu_custom_call.1} parent=1 // pred_check_branch
      %11 = sbr.rel (0) target = $region5
    $region4: #{tpu_custom_call.1} parent=1 // pred_region
      _
    $region5: #{tpu_custom_call.1} parent=1 // pred_fallthru
      _
    // Predicated region
    $region6: #{tpu_custom_call.1} parent=1 // pred_check
      _
    $region7: #{tpu_custom_call.1} parent=1 // pred_check_branch
      %13 = sbr.rel (0) target = $region9
    $region8: #{tpu_custom_call.1} parent=1 // pred_region
      _
    $region9: #{tpu_custom_call.1} parent=1 // pred_fallthru
      _
    // Predicated region
    $region10: #{tpu_custom_call.1} parent=1 // pred_check
      _
    $region11: #{tpu_custom_call.1} parent=1 // pred_check_branch
      %15 = sbr.rel (0) target = $region13
    $region12: #{tpu_custom_call.1} parent=1 // pred_region
      _
    $region13: #{tpu_custom_call.1} parent=1 // pred_fallthru
      _
    // Predicated region
    $region14: #{tpu_custom_call.1} parent=1 // pred_check
      _
    $region15: #{tpu_custom_call.1} parent=1 // pred_check_branch
      %17 = sbr.rel (0) target = $region17
    $region16: #{tpu_custom_call.1} parent=1 // pred_region
      _
    $region17: #{tpu_custom_call.1} parent=1 // pred_fallthru
      _
    %v18 = vld [vmem:[%s0] sm:$0xff]
    %v19 = vld [vmem:[%s0 + $0x8] sm:$0xff]
    %v20 = vld [vmem:[%s0 + $0x10] sm:$0xff]
    %v21 = vld [vmem:[%s0 + $0x18] sm:$0xff]
    %v22 = vld [vmem:[%s2] sm:$0xff]
    %v23 = vld [vmem:[%s2 + $0x8] sm:$0xff]
    %v24 = vld [vmem:[%s2 + $0x10] sm:$0xff]
    %v25 = vld [vmem:[%s2 + $0x18] sm:$0xff]
    %v26 = vld [vmem:[%s2 + $0x20] sm:$0xff]
    %v27 = vld [vmem:[%s2 + $0x28] sm:$0xff]
    %v28 = vld [vmem:[%s2 + $0x30] sm:$0xff]
    %v29 = vld [vmem:[%s2 + $0x38] sm:$0xff]
    %v30 = vld [vmem:[%s2 + $0x40] sm:$0xff]
    %v31 = vld [vmem:[%s2 + $0x48] sm:$0xff]
    %v32 = vld [vmem:[%s2 + $0x50] sm:$0xff]
    %v33 = vld [vmem:[%s2 + $0x58] sm:$0xff]
    %v34 = vld [vmem:[%s2 + $0x60] sm:$0xff]
    %v35 = vld [vmem:[%s2 + $0x68] sm:$0xff]
    %v36 = vld [vmem:[%s2 + $0x70] sm:$0xff]
    %v37 = vld [vmem:[%s2 + $0x78] sm:$0xff]
    %vm38 = vcmask 261120
    %v40 = vsel %vm38, %v18, 0
    %v43 = vsel %vm38, %v19, 0
    %v46 = vsel %vm38, %v20, 0
    %v49 = vsel %vm38, %v21, 0
    %v52 = vsel %vm38, %v22, 0
    %v55 = vsel %vm38, %v23, 0
    %v58 = vsel %vm38, %v24, 0
    %v61 = vsel %vm38, %v25, 0
    %v64 = vsel %vm38, %v26, 0
    %v67 = vsel %vm38, %v27, 0
    %v70 = vsel %vm38, %v28, 0
    %v73 = vsel %vm38, %v29, 0
    %v76 = vsel %vm38, %v30, 0
    %v79 = vsel %vm38, %v31, 0
    %v82 = vsel %vm38, %v32, 0
    %v85 = vsel %vm38, %v33, 0
    %v88 = vsel %vm38, %v34, 0
    %v91 = vsel %vm38, %v35, 0
    %v94 = vsel %vm38, %v36, 0
    %v97 = vsel %vm38, %v37, 0
    %99 = vmatprep.subr.mxu0 0.0
    %100 = vmatpush1.xpose.msra.mxu0 %v52
    %101 = vmatprep.subr.mxu0 0.0
    %102 = vmatpush1.xpose.msra.mxu0 %v55
    %103 = vmatprep.subr.mxu0 0.0
    %104 = vmatpush1.xpose.msra.mxu0 %v58
    %105 = vmatprep.subr.mxu0 0.0
    %106 = vmatpush1.xpose.msra.mxu0 %v61
    %107 = vmatprep.subr.mxu0 0.0
    %108 = vmatpush1.xpose.msra.mxu0 %v64
    %109 = vmatprep.subr.mxu0 0.0
    %110 = vmatpush1.xpose.msra.mxu0 %v67
    %111 = vmatprep.subr.mxu0 0.0
    %112 = vmatpush1.xpose.msra.mxu0 %v70
    %113 = vmatprep.subr.mxu0 0.0
    %114 = vmatpush1.xpose.msra.mxu0 %v73
    %115 = vmatprep.subr.mxu0 0.0
    %116 = vmatpush1.xpose.msra.mxu0 %v76
    %117 = vmatprep.subr.mxu0 0.0
    %118 = vmatpush1.xpose.msra.mxu0 %v79
    %119 = vmatprep.subr.mxu0 0.0
    %120 = vmatpush1.xpose.msra.mxu0 %v82
    %121 = vmatprep.subr.mxu0 0.0
    %122 = vmatpush1.xpose.msra.mxu0 %v85
    %123 = vmatprep.subr.mxu0 0.0
    %124 = vmatpush1.xpose.msra.mxu0 %v88
    %125 = vmatprep.subr.mxu0 0.0
    %126 = vmatpush1.xpose.msra.mxu0 %v91
    %127 = vmatprep.subr.mxu0 0.0
    %128 = vmatpush1.xpose.msra.mxu0 %v94
    %129 = vmatprep.subr.mxu0 0.0
    %130 = vmatpush1.xpose.msra.mxu0 %v97
    %131 = vmatprep.subr.mxu0 0.0
    %132 = vmatpush1.xpose.msra.mxu0 0.0
    %133 = vmatprep.subr.mxu0 0.0
    %134 = vmatpush1.xpose.msra.mxu0 0.0
    %135 = vmatprep.subr.mxu0 0.0
    %136 = vmatpush1.xpose.msra.mxu0 0.0
    %137 = vmatprep.subr.mxu0 0.0
    %138 = vmatpush1.xpose.msra.mxu0 0.0
    %139 = vmatprep.subr.mxu0 0.0
    %140 = vmatpush1.xpose.msra.mxu0 0.0
    %141 = vmatprep.subr.mxu0 0.0
    %142 = vmatpush1.xpose.msra.mxu0 0.0
    %143 = vmatprep.subr.mxu0 0.0
    %144 = vmatpush1.xpose.msra.mxu0 0.0
    %145 = vmatprep.subr.mxu0 0.0
    %146 = vmatpush1.xpose.msra.mxu0 0.0
    %147 = vmatprep.subr.mxu0 0.0
    %148 = vmatpush1.xpose.msra.mxu0 0.0
    %149 = vmatprep.subr.mxu0 0.0
    %150 = vmatpush1.xpose.msra.mxu0 0.0
    %151 = vmatprep.subr.mxu0 0.0
    %152 = vmatpush1.xpose.msra.mxu0 0.0
    %153 = vmatprep.subr.mxu0 0.0
    %154 = vmatpush1.xpose.msra.mxu0 0.0
    %155 = vmatprep.subr.mxu0 0.0
    %156 = vmatpush1.xpose.msra.mxu0 0.0
    %157 = vmatprep.subr.mxu0 0.0
    %158 = vmatpush1.xpose.msra.mxu0 0.0
    %159 = vmatprep.subr.mxu0 0.0
    %160 = vmatpush1.xpose.msra.mxu0 0.0
    %161 = vmatprep.subr.mxu0 0.0
    %162 = vmatpush1.xpose.msra.mxu0 0.0
    %163 = vmatprep.mubr.f32.mxu0 0.0
    %164 = vmatmul.mubr.f32.gmra.mrb[0].mxu0 %v40
    %v165 = vpop.f32.mrb[0].mxu0
    %v166 = vadd.f32 0.0, %v165
    %v167 = vpop.f32.mrb[0].mxu0
    %168 = vmatprep.mubr.f32.mxu0 0.0
    %169 = vmatmul.mubr.f32.gmra.mrb[0].mxu0 %v43
    %v170 = vpop.f32.mrb[0].mxu0
    %v171 = vadd.f32 0.0, %v170
    %v172 = vpop.f32.mrb[0].mxu0
    %173 = vmatprep.mubr.f32.mxu0 0.0
    %174 = vmatmul.mubr.f32.gmra.mrb[0].mxu0 %v46
    %v175 = vpop.f32.mrb[0].mxu0
    %v176 = vadd.f32 0.0, %v175
    %v177 = vpop.f32.mrb[0].mxu0
    %178 = vmatprep.mubr.f32.mxu0 0.0
    %179 = vmatmul.mubr.f32.gmra.mrb[0].mxu0 %v49
    %v180 = vpop.f32.mrb[0].mxu0
    %v181 = vadd.f32 0.0, %v180
    %v182 = vpop.f32.mrb[0].mxu0
    %183 = vdwg.mxu0
    %v184 = vld [vmem:[%s3] sm:$0x1]
    %v185 = vmul.f32 %v166, 2.0
    %v186 = vmul.f32 %v171, 2.0
    %v187 = vmul.f32 %v176, 2.0
    %v188 = vmul.f32 %v181, 2.0
    %v190 = vlaneseq
    %v191 = vshrl.u32 %v190, 7
    %v192 = vsub.s32 0, %v191
    %v193 = vrot.slane %v184, %v192
    %v195 = vsub.f32 %v193, %v185
    %v196 = vsub.f32 %v193, %v186
    %v197 = vsub.f32 %v193, %v187
    %v198 = vsub.f32 %v193, %v188
    %v199 = vlaneseq
    %v200 = vand.u32 %v199, 127
    %201 = vmin.xlane.f32.xlu0 %v195
    %v202 = vpop.xlane.xlu0 %201
    %203 = vmin.xlane.f32.xlu0 %v196
    %v204 = vpop.xlane.xlu0 %203
    %205 = vmin.xlane.f32.xlu0 %v197
    %v206 = vpop.xlane.xlu0 %205
    %207 = vmin.xlane.f32.xlu0 %v198
    %v208 = vpop.xlane.xlu0 %207
    %vm209 = vcmp.eq.f32.partialorder %v195, %v202
    %vm210 = vcmp.eq.f32.partialorder %v196, %v204
    %vm211 = vcmp.eq.f32.partialorder %v197, %v206
    %vm212 = vcmp.eq.f32.partialorder %v198, %v208
    %v213 = vsel %vm209, %v200, 128
    %v214 = vsel %vm210, %v200, 128
    %v215 = vsel %vm211, %v200, 128
    %v216 = vsel %vm212, %v200, 128
    %v217 = vand.u32 %v213, 65535
    %v218 = vshra.s32 %v213, 16
    %v219 = vcvt.s32.f32 %v217
    %v220 = vcvt.s32.f32 %v218
    %221 = vmin.xlane.f32.xlu0 %v220
    %v222 = vpop.xlane.xlu0 %221
    %vm223 = vcmp.eq.f32.partialorder %v220, %v222
    %v224 = vsel %vm223, %v219, inf
    %225 = vmin.xlane.f32.xlu0 %v224
    %v226 = vpop.xlane.xlu0 %225
    %v227 = vcvt.f32.s32 %v226
    %v228 = vcvt.f32.s32 %v222
    %v229 = vshll.u32 %v228, 16
    %v230 = vadd.s32 %v229, %v227
    %v231 = vand.u32 %v214, 65535
    %v232 = vshra.s32 %v214, 16
    %v233 = vcvt.s32.f32 %v231
    %v234 = vcvt.s32.f32 %v232
    %235 = vmin.xlane.f32.xlu0 %v234
    %v236 = vpop.xlane.xlu0 %235
    %vm237 = vcmp.eq.f32.partialorder %v234, %v236
    %v238 = vsel %vm237, %v233, inf
    %239 = vmin.xlane.f32.xlu0 %v238
    %v240 = vpop.xlane.xlu0 %239
    %v241 = vcvt.f32.s32 %v240
    %v242 = vcvt.f32.s32 %v236
    %v243 = vshll.u32 %v242, 16
    %v244 = vadd.s32 %v243, %v241
    %v245 = vand.u32 %v215, 65535
    %v246 = vshra.s32 %v215, 16
    %v247 = vcvt.s32.f32 %v245
    %v248 = vcvt.s32.f32 %v246
    %249 = vmin.xlane.f32.xlu0 %v248
    %v250 = vpop.xlane.xlu0 %249
    %vm251 = vcmp.eq.f32.partialorder %v248, %v250
    %v252 = vsel %vm251, %v247, inf
    %253 = vmin.xlane.f32.xlu0 %v252
    %v254 = vpop.xlane.xlu0 %253
    %v255 = vcvt.f32.s32 %v254
    %v256 = vcvt.f32.s32 %v250
    %v257 = vshll.u32 %v256, 16
    %v258 = vadd.s32 %v257, %v255
    %v259 = vand.u32 %v216, 65535
    %v260 = vshra.s32 %v216, 16
    %v261 = vcvt.s32.f32 %v259
    %v262 = vcvt.s32.f32 %v260
    %263 = vmin.xlane.f32.xlu0 %v262
    %v264 = vpop.xlane.xlu0 %263
    %vm265 = vcmp.eq.f32.partialorder %v262, %v264
    %v266 = vsel %vm265, %v261, inf
    %267 = vmin.xlane.f32.xlu0 %v266
    %v268 = vpop.xlane.xlu0 %267
    %v269 = vcvt.f32.s32 %v268
    %v270 = vcvt.f32.s32 %v264
    %v271 = vshll.u32 %v270, 16
    %v272 = vadd.s32 %v271, %v269
    %vm273 = vcmp.eq.s32.totalorder %v230, %v200
    %vm274 = vcmp.eq.s32.totalorder %v244, %v200
    %vm275 = vcmp.eq.s32.totalorder %v258, %v200
    %vm276 = vcmp.eq.s32.totalorder %v272, %v200
    %v277 = vsel %vm273, 1, 0
    %v278 = vsel %vm274, 1, 0
    %v279 = vsel %vm275, 1, 0
    %v280 = vsel %vm276, 1, 0
    %v281 = vcvt.s32.f32 %v277
    %v282 = vcvt.s32.f32 %v278
    %v283 = vcvt.s32.f32 %v279
    %v284 = vcvt.s32.f32 %v280
    %v285 = vld [vmem:[%s1] sm:$0x3]
    %v287 = vsel %vm38, %v285, 0
    %289 = vmatprep.subr.mxu0 0.0
    %290 = vmatpush1.msra.mxu0 %v281
    %291 = vmatprep.subr.mxu0 0.0
    %292 = vmatpush1.msra.mxu0 %v282
    %293 = vmatprep.subr.mxu0 0.0
    %294 = vmatpush1.msra.mxu0 %v283
    %295 = vmatprep.subr.mxu0 0.0
    %296 = vmatpush1.msra.mxu0 %v284
    %297 = vmatprep.subr.mxu0 0.0
    %298 = vmatpush1.msra.mxu0 0.0
    %299 = vmatprep.subr.mxu0 0.0
    %300 = vmatpush1.msra.mxu0 0.0
    %301 = vmatprep.subr.mxu0 0.0
    %302 = vmatpush1.msra.mxu0 0.0
    %303 = vmatprep.subr.mxu0 0.0
    %304 = vmatpush1.msra.mxu0 0.0
    %305 = vmatprep.subr.mxu0 0.0
    %306 = vmatpush1.msra.mxu0 0.0
    %307 = vmatprep.subr.mxu0 0.0
    %308 = vmatpush1.msra.mxu0 0.0
    %309 = vmatprep.subr.mxu0 0.0
    %310 = vmatpush1.msra.mxu0 0.0
    %311 = vmatprep.subr.mxu0 0.0
    %312 = vmatpush1.msra.mxu0 0.0
    %313 = vmatprep.subr.mxu0 0.0
    %314 = vmatpush1.msra.mxu0 0.0
    %315 = vmatprep.subr.mxu0 0.0
    %316 = vmatpush1.msra.mxu0 0.0
    %317 = vmatprep.subr.mxu0 0.0
    %318 = vmatpush1.msra.mxu0 0.0
    %319 = vmatprep.subr.mxu0 0.0
    %320 = vmatpush1.msra.mxu0 0.0
    %321 = vmatprep.subr.mxu0 0.0
    %322 = vmatpush1.msra.mxu0 0.0
    %323 = vmatprep.subr.mxu0 0.0
    %324 = vmatpush1.msra.mxu0 0.0
    %325 = vmatprep.subr.mxu0 0.0
    %326 = vmatpush1.msra.mxu0 0.0
    %327 = vmatprep.subr.mxu0 0.0
    %328 = vmatpush1.msra.mxu0 0.0
    %329 = vmatprep.subr.mxu0 0.0
    %330 = vmatpush1.msra.mxu0 0.0
    %331 = vmatprep.subr.mxu0 0.0
    %332 = vmatpush1.msra.mxu0 0.0
    %333 = vmatprep.subr.mxu0 0.0
    %334 = vmatpush1.msra.mxu0 0.0
    %335 = vmatprep.subr.mxu0 0.0
    %336 = vmatpush1.msra.mxu0 0.0
    %337 = vmatprep.subr.mxu0 0.0
    %338 = vmatpush1.msra.mxu0 0.0
    %339 = vmatprep.subr.mxu0 0.0
    %340 = vmatpush1.msra.mxu0 0.0
    %341 = vmatprep.subr.mxu0 0.0
    %342 = vmatpush1.msra.mxu0 0.0
    %343 = vmatprep.subr.mxu0 0.0
    %344 = vmatpush1.msra.mxu0 0.0
    %345 = vmatprep.subr.mxu0 0.0
    %346 = vmatpush1.msra.mxu0 0.0
    %347 = vmatprep.subr.mxu0 0.0
    %348 = vmatpush1.msra.mxu0 0.0
    %349 = vmatprep.subr.mxu0 0.0
    %350 = vmatpush1.msra.mxu0 0.0
    %351 = vmatprep.subr.mxu0 0.0
    %352 = vmatpush1.msra.mxu0 0.0
    %353 = vmatprep.mubr.f32.mxu0 0.0
    %354 = vmatmul.mubr.f32.gmra.mrb[0].mxu0 %v287
    %v355 = vpop.f32.mrb[0].mxu0
    %v356 = vadd.f32 0.0, %v355
    %v357 = vpop.f32.mrb[0].mxu0
    %358 = vdwg.mxu0
    %359 = vst [vmem:[#allocation2] sm:$0x3] %v356
    // Predicated region
    $region18: #{tpu_custom_call.1} parent=1 // pred_check
      _
    $region19: #{tpu_custom_call.1} parent=1 // pred_check_branch
      %361 = sbr.rel (0) target = $region21
    $region20: #{tpu_custom_call.1} parent=1 // pred_region
      %s363 = ssub.s32 32, 32
      %364 = vsyncadd [#allocation3], %s363
      %s366 = sshll.u32 [#allocation2], 4
      %s367 = int_to_ptr.vmem [resolvable:$true] %s366
      %369 = dma.vmem_to_hbm [thread:$0]  %s367, 32, %s4, [#allocation3]
    $region21: #{tpu_custom_call.1} parent=1 // pred_fallthru
      _
    // Predicated region
    $region22: #{tpu_custom_call.1} parent=1 // pred_check
      _
    $region23: #{tpu_custom_call.1} parent=1 // pred_check_branch
      %371 = sbr.rel (0) target = $region25
    $region24: #{tpu_custom_call.1} parent=1 // pred_region
      %372 = dma.done [#allocation3], 32
    $region25: #{tpu_custom_call.1} parent=1 // pred_fallthru
      _
    %373 = vsyncpa [#allocation3], 1

</llo_original>
